<compile_context>
chip_gen: v7x
topology: tpu7x:2x2x1
jax: 0.10.0
libtpu: 0.0.40
codegen_flags: <defaults>
</compile_context>

<pallas_src>
import functools

import jax
import jax.numpy as jnp
from jax.experimental import pallas as pl
from jax.experimental.pallas import tpu as pltpu

_LANE = 128
_SUBLANE = 8
_MIN_GRID_STEPS = 8          # target grid depth so pipelining / megacore engage
_PARAM_PIN_MAX_ROWS = 2048   # pin mul/sub fully in VMEM when (R_pad,1) is <=1 MiB


def _cdiv(a, b):
    return -(-a // b)


def _device_tuning():
    """(combined in+out tile byte budget, vmem_limit_bytes) per TPU generation."""
    try:
        kind = jax.devices()[0].device_kind.lower()
    except Exception:  # pragma: no cover - defensive
        kind = ""
    if "v7" in kind:
        # 64 MiB physical VMEM / TC: 2 x (6 MiB in + 6 MiB out) = 24 MiB << 48 MiB.
        return 12 * 1024 * 1024, 48 * 1024 * 1024
    if "v6" in kind:
        # ~4 MiB in-tile at 1.4 TB/s keeps per-step overhead well under 10%.
        return 8 * 1024 * 1024, 64 * 1024 * 1024
    # v5e / v4 / unknown: ~2 MiB in-tile already amortizes the 0.35us/step cost.
    return 4 * 1024 * 1024, 32 * 1024 * 1024


def _choose_tiles(R, HW, in_itemsize, out_itemsize, target_tile_bytes):
    """Pick (TR, TC) for a (R, HW) slab.

    TC is a capped multiple of 128 (full extent only when HW < 128); the
    remainder lane block is masked by Pallas.  TR is a multiple of the
    dtype-aware sublane quantum (8/16/32 rows for 4/2/1-byte dtypes) or the
    full row extent when R is smaller than one quantum.  The budget counts
    input + output tile bytes.  Tiles are then shrunk (TC first, then TR)
    until the grid has at least ~_MIN_GRID_STEPS steps when achievable.
    """
    narrow = max(1, min(in_itemsize, out_itemsize, 4))
    sub_q = _SUBLANE * (4 // narrow)            # 8 / 16 / 32 rows

    bytes_per_elem = in_itemsize + out_itemsize
    target_elems = max(sub_q * _LANE, target_tile_bytes // bytes_per_elem)

    # Lane (spatial) tile: capped multiple of 128.
    if HW < _LANE:
        TC = HW                                  # full extent is always legal
    else:
        max_tc = max(_LANE, (target_elems // sub_q) // _LANE * _LANE)
        TC = min(max_tc, (HW // _LANE) * _LANE)  # remainder lane block is masked

    # Sublane (row = batch*channel) tile.
    if R <= sub_q:
        TR = R                                   # full extent (legal)
    else:
        max_tr = max(sub_q, (target_elems // TC) // sub_q * sub_q)
        TR = min(max_tr, (R // sub_q) * sub_q)   # remainder row block is masked

    # Enforce a minimum grid depth so load/compute/store overlap and the v7x
    # megacore split have something to work with.  Shrink TC first (keeps
    # stores lane-dense), then TR.
    def _steps(tr, tc):
        return _cdiv(R, tr) * _cdiv(HW, tc)

    while _steps(TR, TC) < _MIN_GRID_STEPS and TC > _LANE:
        TC = max(_LANE, (TC // 2) // _LANE * _LANE)
    while _steps(TR, TC) < _MIN_GRID_STEPS and TR > sub_q:
        TR = max(sub_q, (TR // 2) // sub_q * sub_q)

    return TR, TC, sub_q


def _normalize_kernel(x_ref, mul_ref, sub_ref, o_ref, *,
                      block_rows, row_hint, pinned):
    # x_ref:   (TR, TC)                input tile (input dtype)
    # mul_ref: (R_pad, 1) or (TR, 1)   per-row scale (f32)
    # sub_ref: (R_pad, 1) or (TR, 1)   per-row offset (f32)
    # o_ref:   (TR, TC)                output tile (output dtype)
    if pinned:
        row0 = pl.program_id(0) * block_rows
        if row_hint > 1:
            row0 = pl.multiple_of(row0, row_hint)
        mul = mul_ref[pl.ds(row0, block_rows), :]
        sub = sub_ref[pl.ds(row0, block_rows), :]
    else:
        mul = mul_ref[...]
        sub = sub_ref[...]
    x = x_ref[...].astype(jnp.float32)
    # Compute in f32, cast only at the store.
    o_ref[...] = (x * mul - sub).astype(o_ref.dtype)


@functools.partial(jax.jit, static_argnames=("output_cast",))
def normalize_input(img, mean, std, output_cast=None):
    """JAX/Pallas equivalent of NormalizeInputModel.forward (with identity model).

    img: (N, C, H, W) array (NCHW, matching PyTorch).
    mean, std: (C,) arrays.
    output_cast: None | 'full' (f32) | 'half' (bf16 on TPU).
    """
    N, C, H, W = img.shape

    mean = mean.astype(jnp.float32)
    std = std.astype(jnp.float32)
    mul = 1.0 / (255.0 * std)          # (C,) f32
    sub = mean / std                   # (C,) f32

    if output_cast == "half":
        out_dtype = jnp.bfloat16
    elif output_cast == "full":
        out_dtype = jnp.float32
    else:
        out_dtype = img.dtype

    in_item = jnp.dtype(img.dtype).itemsize
    out_item = jnp.dtype(out_dtype).itemsize

    # Flatten NCHW -> (N*C, H*W); per-channel params -> per-row (N*C, 1).
    R = N * C
    HW = H * W
    x2d = img.reshape(R, HW)
    mul_row = jnp.tile(mul, (N,)).reshape(R, 1)
    sub_row = jnp.tile(sub, (N,)).reshape(R, 1)

    target_tile_bytes, vmem_limit = _device_tuning()
    TR, TC, sub_q = _choose_tiles(R, HW, in_item, out_item, target_tile_bytes)

    num_row_blocks = _cdiv(R, TR)
    num_col_blocks = _cdiv(HW, TC)
    grid = (num_row_blocks, num_col_blocks)   # HW axis inner

    # Pin mul/sub fully VMEM-resident when small: one DMA total, no per-block
    # double buffers.  Pad to a whole number of row blocks so the in-kernel
    # dynamic slice never reads out of bounds.
    R_pad = num_row_blocks * TR
    pin_params = R_pad <= _PARAM_PIN_MAX_ROWS
    if pin_params:
        if R_pad != R:
            pad = R_pad - R
            mul_row = jnp.concatenate(
                [mul_row, jnp.ones((pad, 1), jnp.float32)], axis=0)
            sub_row = jnp.concatenate(
                [sub_row, jnp.zeros((pad, 1), jnp.float32)], axis=0)
        param_spec = pl.BlockSpec((R_pad, 1), lambda i, j: (0, 0))
        param_rows = R_pad
    else:
        param_spec = pl.BlockSpec((TR, 1), lambda i, j: (i, 0))
        param_rows = R

    row_hint = sub_q if TR % sub_q == 0 else 1

    kernel = functools.partial(
        _normalize_kernel, block_rows=TR, row_hint=row_hint, pinned=pin_params)

    out2d = pl.pallas_call(
        kernel,
        out_shape=jax.ShapeDtypeStruct((R, HW), out_dtype),
        grid_spec=pltpu.PrefetchScalarGridSpec(
            num_scalar_prefetch=0,
            grid=grid,
            in_specs=[
                pl.BlockSpec((TR, TC), lambda i, j: (i, j)),
                param_spec,
                param_spec,
            ],
            out_specs=pl.BlockSpec((TR, TC), lambda i, j: (i, j)),
        ),
        compiler_params=pltpu.CompilerParams(
            dimension_semantics=("parallel", "parallel"),
            vmem_limit_bytes=vmem_limit,
        ),
        cost_estimate=pl.CostEstimate(
            flops=2 * R * HW,
            transcendentals=0,
            bytes_accessed=R * HW * (in_item + out_item) + 2 * param_rows * 4,
        ),
    )(x2d, mul_row, sub_row)

    normalized = out2d.reshape(N, C, H, W)
    # self.model(img): identity here.
    return normalized


def _jax_reference(img, mean, std):
    C = img.shape[1]
    mul = (1.0 / (255.0 * std)).reshape(1, C, 1, 1)
    sub = (mean / std).reshape(1, C, 1, 1)
    return img.astype(jnp.float32) * mul - sub


if __name__ == "__main__":
    key = jax.random.PRNGKey(0)

    # ---- Test 1: f32 input, default output dtype (f32 math, f32 store) ----
    N, C, H, W = 2, 4, 16, 16
    k1, k2 = jax.random.split(key)
    img = jax.random.uniform(k1, (N, C, H, W), dtype=jnp.float32) * 255.0
    mean4 = jnp.array([0.485, 0.456, 0.406, 0.45], dtype=jnp.float32)
    std4 = jnp.array([0.229, 0.224, 0.225, 0.25], dtype=jnp.float32)
    ref = _jax_reference(img, mean4, std4)

    out = jax.block_until_ready(normalize_input(img, mean4, std4, output_cast=None))
    assert out.shape == (N, C, H, W)
    assert out.dtype == img.dtype
    assert jnp.allclose(out, ref, rtol=1e-6, atol=1e-6), "mismatch (default)"

    # ---- Test 2: 'half' path (f32 math, bf16 store) ----
    out_half = jax.block_until_ready(normalize_input(img, mean4, std4, output_cast="half"))
    assert out_half.dtype == jnp.bfloat16
    assert jnp.allclose(out_half.astype(jnp.float32), ref, rtol=2e-2, atol=5e-2), \
        "mismatch (half)"

    # ---- Test 3: non-128-aligned spatial size + R < sublane quantum, 'full' ----
    N3, C3, H3, W3 = 2, 3, 15, 9          # HW = 135 -> masked lane remainder
    img3 = jax.random.uniform(k2, (N3, C3, H3, W3), dtype=jnp.float32) * 255.0
    mean3 = jnp.array([0.485, 0.456, 0.406], dtype=jnp.float32)
    std3 = jnp.array([0.229, 0.224, 0.225], dtype=jnp.float32)
    ref3 = _jax_reference(img3, mean3, std3)
    out3 = jax.block_until_ready(normalize_input(img3, mean3, std3, output_cast="full"))
    assert out3.dtype == jnp.float32
    assert jnp.allclose(out3, ref3, rtol=1e-6, atol=1e-6), "mismatch (non-aligned)"

    # ---- Test 4: bf16 input, default output (dtype-aware sublane quantum) ----
    img_bf16 = img.astype(jnp.bfloat16)
    ref_bf16 = _jax_reference(img_bf16, mean4, std4)
    out_bf16 = jax.block_until_ready(normalize_input(img_bf16, mean4, std4, output_cast=None))
    assert out_bf16.dtype == jnp.bfloat16
    assert jnp.allclose(out_bf16.astype(jnp.float32), ref_bf16, rtol=1e-2, atol=5e-2), \
        "mismatch (bf16 input)"

    print("KERNEL_OK")
</pallas_src>

<mosaic_0001>
module attributes {stable_mosaic.version = 11 : i64} {
  func.func @_normalize_kernel(%arg0: i32, %arg1: i32, %arg2: memref<8x128xf32, #tpu.memory_space<vmem>>, %arg3: memref<8x1xf32, #tpu.memory_space<vmem>>, %arg4: memref<8x1xf32, #tpu.memory_space<vmem>>, %arg5: memref<8x128xf32, #tpu.memory_space<vmem>>) attributes {dimension_semantics = [#tpu.dimension_semantics<parallel>, #tpu.dimension_semantics<parallel>], iteration_bounds = array<i64: 1, 2>, scalar_prefetch = 0 : i64, scratch_operands = 0 : i64, tpu.core_type = #tpu.core_type<tc>, window_params = [{transform_indices = @transform_0, window_bounds = array<i64: 8, 128>}, {pipeline_mode = #tpu.pipeline_mode<synchronous>, transform_indices = @transform_1, window_bounds = array<i64: 8, 1>}, {pipeline_mode = #tpu.pipeline_mode<synchronous>, transform_indices = @transform_2, window_bounds = array<i64: 8, 1>}, {transform_indices = @transform_3, window_bounds = array<i64: 8, 128>}]} {
    %c8_i32 = arith.constant 8 : i32
    %0 = arith.muli %arg0, %c8_i32 : i32
    %1 = tpu.assume_multiple %0, 8 : i32
    %2 = arith.index_cast %1 : i32 to index
    %c0 = arith.constant 0 : index
    %3 = vector.load %arg3[%2, %c0] : memref<8x1xf32, #tpu.memory_space<vmem>>, vector<8x1xf32>
    %4 = arith.index_cast %1 : i32 to index
    %c0_0 = arith.constant 0 : index
    %5 = vector.load %arg4[%4, %c0_0] : memref<8x1xf32, #tpu.memory_space<vmem>>, vector<8x1xf32>
    %c0_1 = arith.constant 0 : index
    %c0_2 = arith.constant 0 : index
    %6 = vector.load %arg2[%c0_1, %c0_2] : memref<8x128xf32, #tpu.memory_space<vmem>>, vector<8x128xf32>
    %7 = vector.broadcast %3 : vector<8x1xf32> to vector<8x128xf32>
    %8 = arith.mulf %6, %7 : vector<8x128xf32>
    %9 = vector.broadcast %5 : vector<8x1xf32> to vector<8x128xf32>
    %10 = arith.subf %8, %9 : vector<8x128xf32>
    %c0_3 = arith.constant 0 : index
    %c0_4 = arith.constant 0 : index
    %11 = vector.load %arg5[%c0_3, %c0_4] : memref<8x128xf32, #tpu.memory_space<vmem>>, vector<8x128xf32>
    tpu.vector_store %arg5[%c0_3, %c0_4], %10 {strides = array<i32>} : memref<8x128xf32, #tpu.memory_space<vmem>>, vector<8x128xf32>,
    return
  }
  func.func @transform_0(%arg0: i32, %arg1: i32) -> (i32, i32) {
    %c0_i32 = arith.constant 0 : i32
    return %arg0, %arg1 : i32, i32
  }
  func.func @transform_1(%arg0: i32, %arg1: i32) -> (i32, i32) {
    %c0_i32 = arith.constant 0 : i32
    %c0_i32_0 = arith.constant 0 : i32
    %c0_i32_1 = arith.constant 0 : i32
    return %c0_i32, %c0_i32_0 : i32, i32
  }
  func.func @transform_2(%arg0: i32, %arg1: i32) -> (i32, i32) {
    %c0_i32 = arith.constant 0 : i32
    %c0_i32_0 = arith.constant 0 : i32
    %c0_i32_1 = arith.constant 0 : i32
    return %c0_i32, %c0_i32_0 : i32, i32
  }
  func.func @transform_3(%arg0: i32, %arg1: i32) -> (i32, i32) {
    %c0_i32 = arith.constant 0 : i32
    return %arg0, %arg1 : i32, i32
  }
}

</mosaic_0001>

<llo_original>
// kernel: tile.18
$region0: #{tile.18}
  #allocation0 [shape = 's32[1]{0}', space=sflag, size = 0x4, scoped, tag = 'scoped memory for tile.18']
  %s0 = inlined_call_operand.vmem [shape: f32[4], index: 0, kind: input, shape index: {}]
  %s1 = inlined_call_operand.vmem [shape: f32[2,4], index: 1, kind: output, shape index: {}]
  // Predicated region
  $region2: #{tile.18} parent=0 // pred_check
    _
  $region3: #{tile.18} parent=0 // pred_check_branch
    %3 = sbr.rel (0) target = $region5
  $region4: #{tile.18} parent=0 // pred_region
    _
  $region5: #{tile.18} parent=0 // pred_fallthru
    _
  %v4 = vld [vmem:[%s0] ss:$0 sm:$0xff]
  %5 = vst [vmem:[%s1] sm:$0x3] %v4

// kernel: tile.0
$region0: #{tile.0}
  %s0 = inlined_call_operand.vmem [shape: f32[2,4], index: 0, kind: input, shape index: {}]
  %s1 = inlined_call_operand.vmem [shape: f32[8,1], index: 1, kind: output, shape index: {}]
  $region1: #{tile.0} parent=0
    #allocation0 [shape = 'u8[4096]{0}', space=vmem, size = 0x1000, scoped, tag = 'scoped mem for input reshape']
    %s3 = sshllo.u32 0, 2
    %v4 = vld [vmem:[%s0] sm:%s3]
    %5 = vst [vmem:[#allocation0] sm:%s3] %v4
    %v6 = vld [vmem:[#allocation0] sm:$0x3]
    %vm7 = vcmask 7168
    %8 = vst.msk [vmem:[%s1] ss:$4 sm:$0x3] %vm7, %v6
    %v9 = vld [vmem:[#allocation0] sm:$0x3]
    %10 = vrot.lane.b32.xlu0 %v9, 127
    %v11 = vpop.permute.xlu0 %10
    %vm12 = vcmask 7168
    %s13 = scalar_lea.vmem %s1, 1
    %14 = vst.msk [vmem:[%s13] ss:$4 sm:$0x3] %vm12, %v11
    %v15 = vld [vmem:[#allocation0] sm:$0x3]
    %16 = vrot.lane.b32.xlu0 %v15, 126
    %v17 = vpop.permute.xlu0 %16
    %vm18 = vcmask 7168
    %s19 = scalar_lea.vmem %s1, 2
    %20 = vst.msk [vmem:[%s19] ss:$4 sm:$0x3] %vm18, %v17
    %v21 = vld [vmem:[#allocation0] sm:$0x3]
    %22 = vrot.lane.b32.xlu0 %v21, 125
    %v23 = vpop.permute.xlu0 %22
    %vm24 = vcmask 7168
    %s25 = scalar_lea.vmem %s1, 3
    %26 = vst.msk [vmem:[%s25] ss:$4 sm:$0x3] %vm24, %v23

// kernel: normalize_input.1
$region0: #{normalize_input.1}
  #allocation0 [shape = 'u32[]', space=smem, size = 0x4, offset = 0x4, fixed_abs, tag = 'smem constant byte address 0x4 - core index']
  #allocation1 [shape = 'u32[144,128]{1,0:T(1,128)}', space=vmem, size = 0x12000, scoped, tag = 'internal scratch']
  %s0 = inlined_call_operand.vmem [shape: f32[8,256], index: 0, kind: input, shape index: {}]
  %s1 = inlined_call_operand.vmem [shape: f32[8,1], index: 1, kind: input, shape index: {}]
  %s2 = inlined_call_operand.vmem [shape: f32[8,1], index: 2, kind: input, shape index: {}]
  %s3 = inlined_call_operand.vmem [shape: f32[8,256], index: 3, kind: output, shape index: {}]
  %s4 = sld [smem:[#allocation0]]
  $region45: #{normalize_input.1} parent=0
    _
  %s6 = ssub.s32 1, %s4
  %s7 = scalar_select 0, %s6, %s4
  loop: start=0, step=1, limit=4
  $region2: #{normalize_input.1} parent=0 // loop_pre_header
    _
  $region3: #{normalize_input.1} parent=0 // loop_header
    %s9 = sphi 0, %s13
    %p10 = scmp.ge.s32.totalorder %s9, 4
    %s16 = sphi 0, %s28
    %s17 = sphi 0, %s24
    %s18 = sphi 0, %s16
    %s19 = sphi 0, %s17
    %s20 = sphi 0, %s18
    %s21 = sphi 0, %s19
    %s33 = sphi 0, %s35
    %s36 = sphi 0, %s33
    %s37 = sphi 0, %s36
    %s53 = sphi 0, %s37
    %s57 = sphi 0, %s57
    %s59 = sphi 0, %s57
    %s60 = sphi 0, %s59
    %s74 = sphi 0, %s60
    %s78 = sphi 0, %s78
    %s80 = sphi 0, %s78
    %s81 = sphi 0, %s80
    %s95 = sphi 0, %s81
    %s103 = sphi 0, %s105
    %s106 = sphi 0, %s103
    %s107 = sphi 0, %s106
    %s123 = sphi 0, %s107
  $region4: #{normalize_input.1} parent=0 // loop_header_branch
    %12 = sbr.rel (%p10) target = $region8
  $region5: #{normalize_input.1} parent=0 // loop_body
    %s14 = ssub.s32 %s9, 1
    %s15 = ssub.s32 %s9, 2
    %s22 = sadd.s32 1, %s17
    %p23 = scmp.ge.s32.totalorder %s22, 2
    %s24 = scalar_select %p23, 0, %s22
    %s25 = sadd.s32 1, %s16
    %s26 = scalar_select %p23, %s25, %s16
    %p27 = scmp.ge.s32.totalorder %s26, 1
    %s28 = scalar_select %p27, 0, %s26
    %s29 = ssub.s32 %s16, %s28
    %s30 = ssub.s32 %s17, %s24
    %s31 = sor.u32 %s29, %s30
    %p32 = scmp.eq.s32.totalorder %s31, 0
    %s34 = sadd.s32 %s33, 1
    %s35 = scalar_select %p32, %s33, %s34
    %p38 = pneg %p32
    %p39 = scmp.eq.s32.totalorder %s9, 1
    %p40 = por %p38, %p39
    %p41 = scmp.ne.s32.totalorder %s33, %s36
    %p42 = scmp.eq.s32.totalorder %s9, 0
    %p43 = por %p41, %p42
    %p44 = scmp.ne.s32.totalorder %s33, %s36
    %p45 = scmp.eq.s32.totalorder %s14, 1
    %p46 = por %p44, %p45
    %p47 = scmp.ne.s32.totalorder %s36, %s37
    %p48 = scmp.eq.s32.totalorder %s14, 0
    %p49 = por %p47, %p48
    %p50 = scmp.ne.s32.totalorder %s36, %s37
    %p51 = scmp.eq.s32.totalorder %s15, 1
    %p52 = por %p50, %p51
    %p54 = scmp.ne.s32.totalorder %s37, %s53
    %p55 = scmp.eq.s32.totalorder %s15, 0
    %p56 = por %p54, %p55
    %s58 = sadd.s32 %s57, 1
    %p61 = scmp.eq.s32.totalorder %s9, 1
    %p62 = scmp.ne.s32.totalorder %s57, %s59
    %p63 = scmp.eq.s32.totalorder %s9, 0
    %p64 = por %p62, %p63
    %p65 = scmp.ne.s32.totalorder %s57, %s59
    %p66 = scmp.eq.s32.totalorder %s14, 1
    %p67 = por %p65, %p66
    %p68 = scmp.ne.s32.totalorder %s59, %s60
    %p69 = scmp.eq.s32.totalorder %s14, 0
    %p70 = por %p68, %p69
    %p71 = scmp.ne.s32.totalorder %s59, %s60
    %p72 = scmp.eq.s32.totalorder %s15, 1
    %p73 = por %p71, %p72
    %p75 = scmp.ne.s32.totalorder %s60, %s74
    %p76 = scmp.eq.s32.totalorder %s15, 0
    %p77 = por %p75, %p76
    %s79 = sadd.s32 %s78, 1
    %p82 = scmp.eq.s32.totalorder %s9, 1
    %p83 = scmp.ne.s32.totalorder %s78, %s80
    %p84 = scmp.eq.s32.totalorder %s9, 0
    %p85 = por %p83, %p84
    %p86 = scmp.ne.s32.totalorder %s78, %s80
    %p87 = scmp.eq.s32.totalorder %s14, 1
    %p88 = por %p86, %p87
    %p89 = scmp.ne.s32.totalorder %s80, %s81
    %p90 = scmp.eq.s32.totalorder %s14, 0
    %p91 = por %p89, %p90
    %p92 = scmp.ne.s32.totalorder %s80, %s81
    %p93 = scmp.eq.s32.totalorder %s15, 1
    %p94 = por %p92, %p93
    %p96 = scmp.ne.s32.totalorder %s81, %s95
    %p97 = scmp.eq.s32.totalorder %s15, 0
    %p98 = por %p96, %p97
    %s99 = ssub.s32 %s16, %s28
    %s100 = ssub.s32 %s17, %s24
    %s101 = sor.u32 %s99, %s100
    %p102 = scmp.eq.s32.totalorder %s101, 0
    %s104 = sadd.s32 %s103, 1
    %s105 = scalar_select %p102, %s103, %s104
    %p108 = pneg %p102
    %p109 = scmp.eq.s32.totalorder %s9, 1
    %p110 = por %p108, %p109
    %p111 = scmp.ne.s32.totalorder %s103, %s106
    %p112 = scmp.eq.s32.totalorder %s9, 0
    %p113 = por %p111, %p112
    %p114 = scmp.ne.s32.totalorder %s103, %s106
    %p115 = scmp.eq.s32.totalorder %s14, 1
    %p116 = por %p114, %p115
    %p117 = scmp.ne.s32.totalorder %s106, %s107
    %p118 = scmp.eq.s32.totalorder %s14, 0
    %p119 = por %p117, %p118
    %p120 = scmp.ne.s32.totalorder %s106, %s107
    %p121 = scmp.eq.s32.totalorder %s15, 1
    %p122 = por %p120, %p121
    %p124 = scmp.ne.s32.totalorder %s107, %s123
    %p125 = scmp.eq.s32.totalorder %s15, 0
    %p126 = por %p124, %p125
    %p127 = scmp.le.s32.totalorder 1, %s9
    %p128 = scmp.lt.s32.totalorder %s9, 3
    %p129 = pnand %p127, %p128
    %p130 = pneg %p129
    // Predicated region
    $region9: #{normalize_input.1} parent=5 // pred_check
      _
    $region10: #{normalize_input.1} parent=5 // pred_check_branch
      %132 = sbr.rel (%p129) target = $region12
    $region11: #{normalize_input.1} parent=5 // pred_region
      %s133 = ssub.s32 %s9, 1
      // Predicated region
      $region13: #{normalize_input.1} parent=11 // pred_check
        %p134 = pneg %p70
      $region14: #{normalize_input.1} parent=11 // pred_check_branch
        %136 = sbr.rel (%p134) target = $region16
      $region15: #{normalize_input.1} parent=11 // pred_region
        _
      $region16: #{normalize_input.1} parent=11 // pred_fallthru
        _
      // Predicated region
      $region17: #{normalize_input.1} parent=11 // pred_check
        %p137 = pneg %p91
      $region18: #{normalize_input.1} parent=11 // pred_check_branch
        %139 = sbr.rel (%p137) target = $region20
      $region19: #{normalize_input.1} parent=11 // pred_region
        _
      $region20: #{normalize_input.1} parent=11 // pred_fallthru
        _
    $region12: #{normalize_input.1} parent=5 // pred_fallthru
      _
    %p140 = scmp.lt.s32.totalorder %s9, 2
    // Predicated region
    $region21: #{normalize_input.1} parent=5 // pred_check
      %p141 = pneg %p140
    $region22: #{normalize_input.1} parent=5 // pred_check_branch
      %143 = sbr.rel (%p141) target = $region24
    $region23: #{normalize_input.1} parent=5 // pred_region
      // Predicated region
      $region25: #{normalize_input.1} parent=23 // pred_check
        %p144 = pneg %p43
      $region26: #{normalize_input.1} parent=23 // pred_check_branch
        %146 = sbr.rel (%p144) target = $region28
      $region27: #{normalize_input.1} parent=23 // pred_region
        %p147 = scmp.lt.s32.totalorder %s16, 0
        %s148 = scalar_select %p147, %s16, 0
        %p149 = scmp.lt.s32.totalorder %s17, 1
        %s150 = scalar_select %p149, %s17, 1
        %s151 = smul.addr %s148, 2
        %s152 = sadd.s32 %s150, %s151
        %s153 = smul.addr %s152, 8
        %s154 = scalar_lea.vmem %s0, %s153
      $region28: #{normalize_input.1} parent=23 // pred_fallthru
        _
    $region24: #{normalize_input.1} parent=5 // pred_fallthru
      _
    %p155 = scmp.le.s32.totalorder 1, %s9
    %p156 = scmp.lt.s32.totalorder %s9, 3
    %p157 = pnand %p155, %p156
    %p158 = pneg %p157
    // Predicated region
    $region29: #{normalize_input.1} parent=5 // pred_check
      _
    $region30: #{normalize_input.1} parent=5 // pred_check_branch
      %160 = sbr.rel (%p157) target = $region32
    $region31: #{normalize_input.1} parent=5 // pred_region
      %s161 = ssub.s32 %s9, 1
      %p162 = scmp.lt.s32.totalorder %s18, 0
      %s163 = scalar_select %p162, %s18, 0
      %p164 = scmp.lt.s32.totalorder %s19, 1
      %s165 = scalar_select %p164, %s19, 1
      %s166 = smul.addr %s163, 2
      %s167 = sadd.s32 %s165, %s166
      %s168 = smul.addr %s167, 8
      %s169 = scalar_lea.vmem %s0, %s168
      %p170 = pneg %p49
      %p171 = pneg %p46
      %p172 = pneg %p70
      %p173 = pneg %p67
      %p174 = pneg %p91
      %p175 = pneg %p88
      %p176 = pneg %p119
      %p177 = pneg %p116
      %p178 = scmp.lt.s32.totalorder %s18, 0
      %s179 = scalar_select %p178, %s18, 0
      %p180 = scmp.lt.s32.totalorder %s19, 1
      %s181 = scalar_select %p180, %s19, 1
      %s182 = smul.addr %s179, 2
      %s183 = sadd.s32 %s181, %s182
      %s184 = smul.addr %s183, 8
      %s185 = scalar_lea.vmem %s3, %s184
      %p186 = scmp.lt.s32.totalorder %s18, 0
      %s187 = scalar_select %p186, %s18, 0
      %p188 = scmp.lt.s32.totalorder %s19, 1
      %s189 = scalar_select %p188, %s19, 1
      %s190 = smul.addr %s187, 2
      %s191 = sadd.s32 %s189, %s190
      %s192 = smul.addr %s191, 8
      %s193 = scalar_lea.vmem %s0, %s192
      %p194 = scmp.lt.s32.totalorder %s18, 0
      %s195 = scalar_select %p194, %s18, 0
      %p196 = scmp.lt.s32.totalorder %s19, 1
      %s197 = scalar_select %p196, %s19, 1
      %s198 = smul.addr %s195, 2
      %s199 = sadd.s32 %s197, %s198
      %s200 = smul.addr %s199, 8
      %s201 = scalar_lea.vmem %s3, %s200
      %s202 = smul.u32 %s18, 8
      %s203 = scalar_lea.vmem %s1, %s202
      %v204 = vld [vmem:[%s203] sm:$0xff]
      %s205 = scalar_lea.vmem %s2, %s202
      %v206 = vld [vmem:[%s205] sm:$0xff]
      %v207 = vld [vmem:[%s193] sm:$0xff]
      %209 = vset.pattern.permute.xlu0 0
      %210 = vperm.xlu0 %209, %v204
      %v211 = vpop.permute.xlu0 %210
      %v213 = vmul.f32 %v207, %v211
      %215 = vset.pattern.permute.xlu0 0
      %216 = vperm.xlu0 %215, %v206
      %v217 = vpop.permute.xlu0 %216
      %v219 = vsub.f32 %v213, %v217
      %220 = vst [vmem:[%s201] sm:$0xff] %v219
      %p221 = scmp.lt.s32.totalorder %s18, 0
      %s222 = scalar_select %p221, %s18, 0
      %p223 = scmp.lt.s32.totalorder %s19, 1
      %s224 = scalar_select %p223, %s19, 1
      %s225 = smul.addr %s222, 2
      %s226 = sadd.s32 %s224, %s225
      %s227 = smul.addr %s226, 8
      %s228 = scalar_lea.vmem %s3, %s227
      // Predicated region
      $region33: #{normalize_input.1} parent=31 // pred_check
        %p229 = pneg %p116
      $region34: #{normalize_input.1} parent=31 // pred_check_branch
        %231 = sbr.rel (%p229) target = $region36
      $region35: #{normalize_input.1} parent=31 // pred_region
        _
      $region36: #{normalize_input.1} parent=31 // pred_fallthru
        _
    $region32: #{normalize_input.1} parent=5 // pred_fallthru
      _
    %p232 = scmp.le.s32.totalorder 2, %s9
    // Predicated region
    $region37: #{normalize_input.1} parent=5 // pred_check
      %p233 = pneg %p232
    $region38: #{normalize_input.1} parent=5 // pred_check_branch
      %235 = sbr.rel (%p233) target = $region40
    $region39: #{normalize_input.1} parent=5 // pred_region
      %s236 = ssub.s32 %s9, 2
      // Predicated region
      $region41: #{normalize_input.1} parent=39 // pred_check
        %p237 = pneg %p122
      $region42: #{normalize_input.1} parent=39 // pred_check_branch
        %239 = sbr.rel (%p237) target = $region44
      $region43: #{normalize_input.1} parent=39 // pred_region
        %p240 = scmp.lt.s32.totalorder %s20, 0
        %s241 = scalar_select %p240, %s20, 0
        %p242 = scmp.lt.s32.totalorder %s21, 1
        %s243 = scalar_select %p242, %s21, 1
        %s244 = smul.addr %s241, 2
        %s245 = sadd.s32 %s243, %s244
        %s246 = smul.addr %s245, 8
        %s247 = scalar_lea.vmem %s3, %s246
      $region44: #{normalize_input.1} parent=39 // pred_fallthru
        _
    $region40: #{normalize_input.1} parent=5 // pred_fallthru
      _
  $region6: #{normalize_input.1} parent=0 // loop_footer
    %s13 = sadd.s32 1, %s9
  $region7: #{normalize_input.1} parent=0 // loop_footer_branch
    %8 = sbr.rel target = $region3
  $region8: #{normalize_input.1} parent=0 // loop_exit
    _

</llo_original>
